<compile_context>
chip_gen: v6e
topology: v6e:2x2x1
jax: 0.10.0
libtpu: 0.0.40
codegen_flags: <defaults>
</compile_context>

<pallas_src>
import jax
import jax.numpy as jnp
from jax.experimental import pallas as pl
from jax.experimental.pallas import tpu as pltpu


def _dvp_mlp_kernel(xk_ref, xr_ref,
                    mw1_ref, mb1_ref, mw2_ref, mb2_ref,
                    w0k_ref, w0r_ref, b0_ref, w1_ref, b1_ref, w2_ref, b2_ref,
                    o_ref):
    xk = xk_ref[...]                    # (tm, k0_dim)   lane-0 aligned
    xr = xr_ref[...]                    # (tm, in_dim - k0_dim)

    # mapping_network: Linear -> ReLU -> Linear   (kept in f32 throughout)
    h = jnp.dot(xk, mw1_ref[...], preferred_element_type=jnp.float32) + mb1_ref[...]
    h = jnp.maximum(h, 0.0)
    h = jnp.dot(h, mw2_ref[...], preferred_element_type=jnp.float32) + mb2_ref[...]

    # Fused "concat + first net layer":  [h, xr] @ w0 == h @ w0_top + xr @ w0_bot
    a = (jnp.dot(h, w0k_ref[...], preferred_element_type=jnp.float32)
         + jnp.dot(xr, w0r_ref[...], preferred_element_type=jnp.float32)
         + b0_ref[...])
    a = jnp.maximum(a, 0.0)

    a = jnp.dot(a, w1_ref[...], preferred_element_type=jnp.float32) + b1_ref[...]
    a = jnp.maximum(a, 0.0)

    out = jnp.dot(a, w2_ref[...], preferred_element_type=jnp.float32) + b2_ref[...]
    o_ref[...] = out.astype(o_ref.dtype)        # (tm, 128) lane-dense store


def _round_up(n, m):
    return ((n + m - 1) // m) * m


def dvp_mlp(x, params, *, k0_dim, tm=1024):
    """x: (N, in_dim) float32. params: dict of weight/bias arrays (see init_params)."""
    N, in_dim = x.shape
    r_dim = in_dim - k0_dim
    assert r_dim > 0, "this kernel assumes k0_dim < in_dim (as in the DVP_MLP use case)"
    width = params["w1"].shape[0]
    out_dim = params["w2"].shape[1]
    out_pad = _round_up(out_dim, 128)          # lane-dense output slab

    # Row tile: multiple of 8, never larger than the (8-padded) row count.
    tm = max(8, min(tm, _round_up(N, 8)))
    n_pad = _round_up(N, tm)

    # Wrapper-side slicing / padding (one-time XLA ops; both operands arrive lane-0 aligned).
    xk = x[:, :k0_dim]
    xr = x[:, k0_dim:]
    if n_pad != N:
        row_pad = ((0, n_pad - N), (0, 0))
        xk = jnp.pad(xk, row_pad)
        xr = jnp.pad(xr, row_pad)

    w0k = params["w0"][:k0_dim]                # (k0_dim, width)
    w0r = params["w0"][k0_dim:]                # (r_dim,  width)
    w2 = params["w2"]
    b2 = params["b2"]
    if out_pad != out_dim:
        w2 = jnp.pad(w2, ((0, 0), (0, out_pad - out_dim)))
        b2 = jnp.pad(b2, ((0, 0), (0, out_pad - out_dim)))

    def full_spec(shape):
        # whole-array block; constant index_map -> DMA'd once, resident across the grid
        return pl.BlockSpec(shape, lambda i: tuple(0 for _ in shape))

    out = pl.pallas_call(
        _dvp_mlp_kernel,
        out_shape=jax.ShapeDtypeStruct((n_pad, out_pad), x.dtype),
        grid_spec=pltpu.PrefetchScalarGridSpec(
            num_scalar_prefetch=0,
            grid=(n_pad // tm,),
            in_specs=[
                pl.BlockSpec((tm, k0_dim), lambda i: (i, 0)),   # xk rows
                pl.BlockSpec((tm, r_dim), lambda i: (i, 0)),    # xr rows
                full_spec((k0_dim, k0_dim)),                    # mw1
                full_spec((1, k0_dim)),                         # mb1
                full_spec((k0_dim, k0_dim)),                    # mw2
                full_spec((1, k0_dim)),                         # mb2
                full_spec((k0_dim, width)),                     # w0 top rows
                full_spec((r_dim, width)),                      # w0 bottom rows
                full_spec((1, width)),                          # b0
                full_spec((width, width)),                      # w1
                full_spec((1, width)),                          # b1
                full_spec((width, out_pad)),                    # w2 (lane-padded)
                full_spec((1, out_pad)),                        # b2 (lane-padded)
            ],
            out_specs=pl.BlockSpec((tm, out_pad), lambda i: (i, 0)),
        ),
        compiler_params=pltpu.CompilerParams(
            dimension_semantics=("parallel",)),
    )(xk, xr,
      params["mw1"], params["mb1"], params["mw2"], params["mb2"],
      w0k, w0r, params["b0"], params["w1"], params["b1"], w2, b2)

    return out[:N, :out_dim]


def dvp_mlp_reference(x, params, *, k0_dim):
    xk, xr = x[:, :k0_dim], x[:, k0_dim:]
    h = jnp.maximum(xk @ params["mw1"] + params["mb1"], 0.0)
    h = h @ params["mw2"] + params["mb2"]
    z = jnp.concatenate([h, xr], axis=1)
    a = jnp.maximum(z @ params["w0"] + params["b0"], 0.0)
    a = jnp.maximum(a @ params["w1"] + params["b1"], 0.0)
    return a @ params["w2"] + params["b2"]


def init_params(key, *, in_dim, k0_dim, width, out_dim):
    ks = jax.random.split(key, 10)
    scale = 0.1
    return {
        # mapping_network: Linear(k0,k0) -> ReLU -> Linear(k0,k0)
        "mw1": scale * jax.random.normal(ks[0], (k0_dim, k0_dim), jnp.float32),
        "mb1": scale * jax.random.normal(ks[1], (1, k0_dim), jnp.float32),
        "mw2": scale * jax.random.normal(ks[2], (k0_dim, k0_dim), jnp.float32),
        "mb2": scale * jax.random.normal(ks[3], (1, k0_dim), jnp.float32),
        # net (depth=3): Linear(in,width) -> ReLU -> Linear(width,width) -> ReLU -> Linear(width,out)
        "w0": scale * jax.random.normal(ks[4], (in_dim, width), jnp.float32),
        "b0": scale * jax.random.normal(ks[5], (1, width), jnp.float32),
        "w1": scale * jax.random.normal(ks[6], (width, width), jnp.float32),
        "b1": scale * jax.random.normal(ks[7], (1, width), jnp.float32),
        "w2": scale * jax.random.normal(ks[8], (width, out_dim), jnp.float32),
        "b2": jnp.zeros((1, out_dim), jnp.float32),  # nn.init.constant_(net[-1].bias, 0)
    }


if __name__ == "__main__":
    # Small shapes consistent with the module: depth=3, width=32, in_dim=16, k0_dim=8, out_dim=3.
    # N deliberately NOT a multiple of 8 to exercise the padding path.
    N, in_dim, k0_dim, width, out_dim = 20, 16, 8, 32, 3

    key = jax.random.PRNGKey(0)
    kx, kp = jax.random.split(key)
    x = jax.random.normal(kx, (N, in_dim), jnp.float32)
    params = init_params(kp, in_dim=in_dim, k0_dim=k0_dim, width=width, out_dim=out_dim)

    out = dvp_mlp(x, params, k0_dim=k0_dim)        # default tm=1024, clamped internally
    out = jax.block_until_ready(out)

    ref = dvp_mlp_reference(x, params, k0_dim=k0_dim)
    assert out.shape == (N, out_dim)
    assert jnp.allclose(out, ref, atol=1e-5, rtol=1e-5)

    print("KERNEL_OK")
</pallas_src>

<mosaic_0001>
module attributes {stable_mosaic.version = 11 : i64} {
  func.func @_dvp_mlp_kernel(%arg0: i32, %arg1: memref<24x8xf32, #tpu.memory_space<vmem>>, %arg2: memref<24x8xf32, #tpu.memory_space<vmem>>, %arg3: memref<8x8xf32, #tpu.memory_space<vmem>>, %arg4: memref<1x8xf32, #tpu.memory_space<vmem>>, %arg5: memref<8x8xf32, #tpu.memory_space<vmem>>, %arg6: memref<1x8xf32, #tpu.memory_space<vmem>>, %arg7: memref<8x32xf32, #tpu.memory_space<vmem>>, %arg8: memref<8x32xf32, #tpu.memory_space<vmem>>, %arg9: memref<1x32xf32, #tpu.memory_space<vmem>>, %arg10: memref<32x32xf32, #tpu.memory_space<vmem>>, %arg11: memref<1x32xf32, #tpu.memory_space<vmem>>, %arg12: memref<32x128xf32, #tpu.memory_space<vmem>>, %arg13: memref<1x128xf32, #tpu.memory_space<vmem>>, %arg14: memref<24x128xf32, #tpu.memory_space<vmem>>) attributes {dimension_semantics = [#tpu.dimension_semantics<parallel>], iteration_bounds = array<i64: 1>, scalar_prefetch = 0 : i64, scratch_operands = 0 : i64, tpu.core_type = #tpu.core_type<tc>, window_params = [{transform_indices = @transform_0, window_bounds = array<i64: 24, 8>}, {transform_indices = @transform_1, window_bounds = array<i64: 24, 8>}, {pipeline_mode = #tpu.pipeline_mode<synchronous>, transform_indices = @transform_2, window_bounds = array<i64: 8, 8>}, {pipeline_mode = #tpu.pipeline_mode<synchronous>, transform_indices = @transform_3, window_bounds = array<i64: 1, 8>}, {pipeline_mode = #tpu.pipeline_mode<synchronous>, transform_indices = @transform_4, window_bounds = array<i64: 8, 8>}, {pipeline_mode = #tpu.pipeline_mode<synchronous>, transform_indices = @transform_5, window_bounds = array<i64: 1, 8>}, {pipeline_mode = #tpu.pipeline_mode<synchronous>, transform_indices = @transform_6, window_bounds = array<i64: 8, 32>}, {pipeline_mode = #tpu.pipeline_mode<synchronous>, transform_indices = @transform_7, window_bounds = array<i64: 8, 32>}, {pipeline_mode = #tpu.pipeline_mode<synchronous>, transform_indices = @transform_8, window_bounds = array<i64: 1, 32>}, {pipeline_mode = #tpu.pipeline_mode<synchronous>, transform_indices = @transform_9, window_bounds = array<i64: 32, 32>}, {pipeline_mode = #tpu.pipeline_mode<synchronous>, transform_indices = @transform_10, window_bounds = array<i64: 1, 32>}, {pipeline_mode = #tpu.pipeline_mode<synchronous>, transform_indices = @transform_11, window_bounds = array<i64: 32, 128>}, {pipeline_mode = #tpu.pipeline_mode<synchronous>, transform_indices = @transform_12, window_bounds = array<i64: 1, 128>}, {transform_indices = @transform_13, window_bounds = array<i64: 24, 128>}]} {
    %c0 = arith.constant 0 : index
    %c0_0 = arith.constant 0 : index
    %0 = vector.load %arg1[%c0, %c0_0] : memref<24x8xf32, #tpu.memory_space<vmem>>, vector<24x8xf32>
    %c0_1 = arith.constant 0 : index
    %c0_2 = arith.constant 0 : index
    %1 = vector.load %arg2[%c0_1, %c0_2] : memref<24x8xf32, #tpu.memory_space<vmem>>, vector<24x8xf32>
    %c0_3 = arith.constant 0 : index
    %c0_4 = arith.constant 0 : index
    %2 = vector.load %arg3[%c0_3, %c0_4] : memref<8x8xf32, #tpu.memory_space<vmem>>, vector<8x8xf32>
    %cst = arith.constant dense<0.000000e+00> : vector<24x8xf32>
    %3 = tpu.matmul %0, %2, %cst {dimension_numbers = #tpu.dot_dimension_numbers<[1], [0], [0], [1], [0, 0, 1, 1], [], []>} : vector<24x8xf32>, vector<8x8xf32>, vector<24x8xf32> -> vector<24x8xf32>
    %c0_5 = arith.constant 0 : index
    %c0_6 = arith.constant 0 : index
    %4 = vector.load %arg4[%c0_5, %c0_6] : memref<1x8xf32, #tpu.memory_space<vmem>>, vector<1x8xf32>
    %5 = vector.broadcast %4 : vector<1x8xf32> to vector<24x8xf32>
    %6 = arith.addf %3, %5 : vector<24x8xf32>
    %cst_7 = arith.constant 0.000000e+00 : f32
    %7 = vector.broadcast %cst_7 : f32 to vector<24x8xf32>
    %8 = arith.maximumf %6, %7 : vector<24x8xf32>
    %c0_8 = arith.constant 0 : index
    %c0_9 = arith.constant 0 : index
    %9 = vector.load %arg5[%c0_8, %c0_9] : memref<8x8xf32, #tpu.memory_space<vmem>>, vector<8x8xf32>
    %cst_10 = arith.constant dense<0.000000e+00> : vector<24x8xf32>
    %10 = tpu.matmul %8, %9, %cst_10 {dimension_numbers = #tpu.dot_dimension_numbers<[1], [0], [0], [1], [0, 0, 1, 1], [], []>} : vector<24x8xf32>, vector<8x8xf32>, vector<24x8xf32> -> vector<24x8xf32>
    %c0_11 = arith.constant 0 : index
    %c0_12 = arith.constant 0 : index
    %11 = vector.load %arg6[%c0_11, %c0_12] : memref<1x8xf32, #tpu.memory_space<vmem>>, vector<1x8xf32>
    %12 = vector.broadcast %11 : vector<1x8xf32> to vector<24x8xf32>
    %13 = arith.addf %10, %12 : vector<24x8xf32>
    %c0_13 = arith.constant 0 : index
    %c0_14 = arith.constant 0 : index
    %14 = vector.load %arg7[%c0_13, %c0_14] : memref<8x32xf32, #tpu.memory_space<vmem>>, vector<8x32xf32>
    %cst_15 = arith.constant dense<0.000000e+00> : vector<24x32xf32>
    %15 = tpu.matmul %13, %14, %cst_15 {dimension_numbers = #tpu.dot_dimension_numbers<[1], [0], [0], [1], [0, 0, 1, 1], [], []>} : vector<24x8xf32>, vector<8x32xf32>, vector<24x32xf32> -> vector<24x32xf32>
    %c0_16 = arith.constant 0 : index
    %c0_17 = arith.constant 0 : index
    %16 = vector.load %arg8[%c0_16, %c0_17] : memref<8x32xf32, #tpu.memory_space<vmem>>, vector<8x32xf32>
    %cst_18 = arith.constant dense<0.000000e+00> : vector<24x32xf32>
    %17 = tpu.matmul %1, %16, %cst_18 {dimension_numbers = #tpu.dot_dimension_numbers<[1], [0], [0], [1], [0, 0, 1, 1], [], []>} : vector<24x8xf32>, vector<8x32xf32>, vector<24x32xf32> -> vector<24x32xf32>
    %18 = arith.addf %15, %17 : vector<24x32xf32>
    %c0_19 = arith.constant 0 : index
    %c0_20 = arith.constant 0 : index
    %19 = vector.load %arg9[%c0_19, %c0_20] : memref<1x32xf32, #tpu.memory_space<vmem>>, vector<1x32xf32>
    %20 = vector.broadcast %19 : vector<1x32xf32> to vector<24x32xf32>
    %21 = arith.addf %18, %20 : vector<24x32xf32>
    %cst_21 = arith.constant 0.000000e+00 : f32
    %22 = vector.broadcast %cst_21 : f32 to vector<24x32xf32>
    %23 = arith.maximumf %21, %22 : vector<24x32xf32>
    %c0_22 = arith.constant 0 : index
    %c0_23 = arith.constant 0 : index
    %24 = vector.load %arg10[%c0_22, %c0_23] : memref<32x32xf32, #tpu.memory_space<vmem>>, vector<32x32xf32>
    %cst_24 = arith.constant dense<0.000000e+00> : vector<24x32xf32>
    %25 = tpu.matmul %23, %24, %cst_24 {dimension_numbers = #tpu.dot_dimension_numbers<[1], [0], [0], [1], [0, 0, 1, 1], [], []>} : vector<24x32xf32>, vector<32x32xf32>, vector<24x32xf32> -> vector<24x32xf32>
    %c0_25 = arith.constant 0 : index
    %c0_26 = arith.constant 0 : index
    %26 = vector.load %arg11[%c0_25, %c0_26] : memref<1x32xf32, #tpu.memory_space<vmem>>, vector<1x32xf32>
    %27 = vector.broadcast %26 : vector<1x32xf32> to vector<24x32xf32>
    %28 = arith.addf %25, %27 : vector<24x32xf32>
    %cst_27 = arith.constant 0.000000e+00 : f32
    %29 = vector.broadcast %cst_27 : f32 to vector<24x32xf32>
    %30 = arith.maximumf %28, %29 : vector<24x32xf32>
    %c0_28 = arith.constant 0 : index
    %c0_29 = arith.constant 0 : index
    %31 = vector.load %arg12[%c0_28, %c0_29] : memref<32x128xf32, #tpu.memory_space<vmem>>, vector<32x128xf32>
    %cst_30 = arith.constant dense<0.000000e+00> : vector<24x128xf32>
    %32 = tpu.matmul %30, %31, %cst_30 {dimension_numbers = #tpu.dot_dimension_numbers<[1], [0], [0], [1], [0, 0, 1, 1], [], []>} : vector<24x32xf32>, vector<32x128xf32>, vector<24x128xf32> -> vector<24x128xf32>
    %c0_31 = arith.constant 0 : index
    %c0_32 = arith.constant 0 : index
    %33 = vector.load %arg13[%c0_31, %c0_32] : memref<1x128xf32, #tpu.memory_space<vmem>>, vector<1x128xf32>
    %34 = vector.broadcast %33 : vector<1x128xf32> to vector<24x128xf32>
    %35 = arith.addf %32, %34 : vector<24x128xf32>
    %c0_33 = arith.constant 0 : index
    %c0_34 = arith.constant 0 : index
    %36 = vector.load %arg14[%c0_33, %c0_34] : memref<24x128xf32, #tpu.memory_space<vmem>>, vector<24x128xf32>
    tpu.vector_store %arg14[%c0_33, %c0_34], %35 {strides = array<i32>} : memref<24x128xf32, #tpu.memory_space<vmem>>, vector<24x128xf32>,
    return
  }
  func.func @transform_0(%arg0: i32) -> (i32, i32) {
    %c0_i32 = arith.constant 0 : i32
    %c0_i32_0 = arith.constant 0 : i32
    return %arg0, %c0_i32 : i32, i32
  }
  func.func @transform_1(%arg0: i32) -> (i32, i32) {
    %c0_i32 = arith.constant 0 : i32
    %c0_i32_0 = arith.constant 0 : i32
    return %arg0, %c0_i32 : i32, i32
  }
  func.func @transform_2(%arg0: i32) -> (i32, i32) {
    %c0_i32 = arith.constant 0 : i32
    %c0_i32_0 = arith.constant 0 : i32
    %c0_i32_1 = arith.constant 0 : i32
    return %c0_i32, %c0_i32_0 : i32, i32
  }
  func.func @transform_3(%arg0: i32) -> (i32, i32) {
    %c0_i32 = arith.constant 0 : i32
    %c0_i32_0 = arith.constant 0 : i32
    %c0_i32_1 = arith.constant 0 : i32
    return %c0_i32, %c0_i32_0 : i32, i32
  }
  func.func @transform_4(%arg0: i32) -> (i32, i32) {
    %c0_i32 = arith.constant 0 : i32
    %c0_i32_0 = arith.constant 0 : i32
    %c0_i32_1 = arith.constant 0 : i32
    return %c0_i32, %c0_i32_0 : i32, i32
  }
  func.func @transform_5(%arg0: i32) -> (i32, i32) {
    %c0_i32 = arith.constant 0 : i32
    %c0_i32_0 = arith.constant 0 : i32
    %c0_i32_1 = arith.constant 0 : i32
    return %c0_i32, %c0_i32_0 : i32, i32
  }
  func.func @transform_6(%arg0: i32) -> (i32, i32) {
    %c0_i32 = arith.constant 0 : i32
    %c0_i32_0 = arith.constant 0 : i32
    %c0_i32_1 = arith.constant 0 : i32
    return %c0_i32, %c0_i32_0 : i32, i32
  }
  func.func @transform_7(%arg0: i32) -> (i32, i32) {
    %c0_i32 = arith.constant 0 : i32
    %c0_i32_0 = arith.constant 0 : i32
    %c0_i32_1 = arith.constant 0 : i32
    return %c0_i32, %c0_i32_0 : i32, i32
  }
  func.func @transform_8(%arg0: i32) -> (i32, i32) {
    %c0_i32 = arith.constant 0 : i32
    %c0_i32_0 = arith.constant 0 : i32
    %c0_i32_1 = arith.constant 0 : i32
    return %c0_i32, %c0_i32_0 : i32, i32
  }
  func.func @transform_9(%arg0: i32) -> (i32, i32) {
    %c0_i32 = arith.constant 0 : i32
    %c0_i32_0 = arith.constant 0 : i32
    %c0_i32_1 = arith.constant 0 : i32
    return %c0_i32, %c0_i32_0 : i32, i32
  }
  func.func @transform_10(%arg0: i32) -> (i32, i32) {
    %c0_i32 = arith.constant 0 : i32
    %c0_i32_0 = arith.constant 0 : i32
    %c0_i32_1 = arith.constant 0 : i32
    return %c0_i32, %c0_i32_0 : i32, i32
  }
  func.func @transform_11(%arg0: i32) -> (i32, i32) {
    %c0_i32 = arith.constant 0 : i32
    %c0_i32_0 = arith.constant 0 : i32
    %c0_i32_1 = arith.constant 0 : i32
    return %c0_i32, %c0_i32_0 : i32, i32
  }
  func.func @transform_12(%arg0: i32) -> (i32, i32) {
    %c0_i32 = arith.constant 0 : i32
    %c0_i32_0 = arith.constant 0 : i32
    %c0_i32_1 = arith.constant 0 : i32
    return %c0_i32, %c0_i32_0 : i32, i32
  }
  func.func @transform_13(%arg0: i32) -> (i32, i32) {
    %c0_i32 = arith.constant 0 : i32
    %c0_i32_0 = arith.constant 0 : i32
    return %arg0, %c0_i32 : i32, i32
  }
}

</mosaic_0001>

<llo_original>
// kernel: tpu_custom_call.1
$region0: #{tpu_custom_call.1}
  #allocation0 [shape = 'u32[]', space=smem, size = 0x4, offset = 0x4, fixed_abs, tag = 'smem constant byte address 0x4 - core index']
  #allocation1 [shape = 'u32[144,128]{1,0:T(1,128)}', space=vmem, size = 0x12000, scoped, tag = 'internal scratch']
  %s0 = inlined_call_operand.vmem [shape: f32[24,8], index: 0, kind: input, shape index: {}]
  %s1 = inlined_call_operand.vmem [shape: f32[24,8], index: 1, kind: input, shape index: {}]
  %s2 = inlined_call_operand.hbm [shape: f32[8,8], index: 2, kind: input, shape index: {}]
  %s3 = inlined_call_operand.vmem [shape: f32[1,8], index: 3, kind: input, shape index: {}]
  %s4 = inlined_call_operand.hbm [shape: f32[8,8], index: 4, kind: input, shape index: {}]
  %s5 = inlined_call_operand.hbm [shape: f32[1,8], index: 5, kind: input, shape index: {}]
  %s6 = inlined_call_operand.vmem [shape: f32[8,32], index: 6, kind: input, shape index: {}]
  %s7 = inlined_call_operand.hbm [shape: f32[8,32], index: 7, kind: input, shape index: {}]
  %s8 = inlined_call_operand.vmem [shape: f32[1,32], index: 8, kind: input, shape index: {}]
  %s9 = inlined_call_operand.vmem [shape: f32[32,32], index: 9, kind: input, shape index: {}]
  %s10 = inlined_call_operand.vmem [shape: f32[1,32], index: 10, kind: input, shape index: {}]
  %s11 = inlined_call_operand.vmem [shape: f32[32,128], index: 11, kind: input, shape index: {}]
  %s12 = inlined_call_operand.vmem [shape: f32[1,128], index: 12, kind: input, shape index: {}]
  %s13 = inlined_call_operand.hbm [shape: f32[24,128], index: 13, kind: output, shape index: {}]
  %s14 = sld [smem:[#allocation0]]
  $region78: #{tpu_custom_call.1} parent=0
    _
  %s16 = ssub.s32 1, %s14
  %s17 = scalar_select 0, %s16, %s14
  $region1: #{tpu_custom_call.1} parent=0
    #allocation2 [shape = 'u8[4096]{0}', space=vmem, size = 0x1000, scoped, tag = 'input window, operand 2, single buffered']
    #allocation3 [shape = 's32[1]{0}', space=sflag, size = 0x4, scoped, tag = 'scoped memory for tpu_custom_call.1']
    #allocation4 [shape = 's32[1]{0}', space=sflag, size = 0x4, scoped, tag = 'scoped memory for tpu_custom_call.1']
    #allocation5 [shape = 'u8[4096]{0}', space=vmem, size = 0x1000, scoped, tag = 'input window, operand 4, single buffered']
    #allocation6 [shape = 's32[1]{0}', space=sflag, size = 0x4, scoped, tag = 'scoped memory for tpu_custom_call.1']
    #allocation7 [shape = 'u8[512]{0}', space=vmem, size = 0x400, scoped, tag = 'input window, operand 5, single buffered']
    #allocation8 [shape = 'u8[4096]{0}', space=vmem, size = 0x1000, scoped, tag = 'input window, operand 7, single buffered']
    #allocation9 [shape = 's32[1]{0}', space=sflag, size = 0x4, scoped, tag = 'scoped memory for tpu_custom_call.1']
    #allocation10 [shape = 'u8[12288]{0}', space=vmem, size = 0x3000, scoped, tag = 'output window, operand 0, single buffered']
    %18 = vsyncpa [#allocation3], 0
    %19 = vsyncpa [#allocation6], 0
    %20 = vsyncpa [#allocation9], 0
    %21 = vsyncpa [#allocation4], 0
    // Predicated region
    $region2: #{tpu_custom_call.1} parent=1 // pred_check
      _
    $region3: #{tpu_custom_call.1} parent=1 // pred_check_branch
      %23 = sbr.rel (0) target = $region5
    $region4: #{tpu_custom_call.1} parent=1 // pred_region
      _
    $region5: #{tpu_custom_call.1} parent=1 // pred_fallthru
      _
    // Predicated region
    $region6: #{tpu_custom_call.1} parent=1 // pred_check
      _
    $region7: #{tpu_custom_call.1} parent=1 // pred_check_branch
      %25 = sbr.rel (0) target = $region9
    $region8: #{tpu_custom_call.1} parent=1 // pred_region
      _
    $region9: #{tpu_custom_call.1} parent=1 // pred_fallthru
      _
    // Predicated region
    $region10: #{tpu_custom_call.1} parent=1 // pred_check
      _
    $region11: #{tpu_custom_call.1} parent=1 // pred_check_branch
      %27 = sbr.rel (0) target = $region13
    $region12: #{tpu_custom_call.1} parent=1 // pred_region
      %s29 = ssub.s32 128, 128
      %30 = vsyncadd [#allocation3], %s29
      %s32 = sshll.u32 [#allocation2], 4
      %s33 = int_to_ptr.vmem [resolvable:$true] %s32
      %35 = dma.hbm_to_vmem [thread:$0]  %s2, 128, %s33, [#allocation3]
    $region13: #{tpu_custom_call.1} parent=1 // pred_fallthru
      _
    // Predicated region
    $region14: #{tpu_custom_call.1} parent=1 // pred_check
      _
    $region15: #{tpu_custom_call.1} parent=1 // pred_check_branch
      %37 = sbr.rel (0) target = $region17
    $region16: #{tpu_custom_call.1} parent=1 // pred_region
      _
    $region17: #{tpu_custom_call.1} parent=1 // pred_fallthru
      _
    // Predicated region
    $region18: #{tpu_custom_call.1} parent=1 // pred_check
      _
    $region19: #{tpu_custom_call.1} parent=1 // pred_check_branch
      %39 = sbr.rel (0) target = $region21
    $region20: #{tpu_custom_call.1} parent=1 // pred_region
      %s41 = ssub.s32 128, 128
      %42 = vsyncadd [#allocation6], %s41
      %s44 = sshll.u32 [#allocation5], 4
      %s45 = int_to_ptr.vmem [resolvable:$true] %s44
      %47 = dma.hbm_to_vmem [thread:$0]  %s4, 128, %s45, [#allocation6]
    $region21: #{tpu_custom_call.1} parent=1 // pred_fallthru
      _
    // Predicated region
    $region22: #{tpu_custom_call.1} parent=1 // pred_check
      _
    $region23: #{tpu_custom_call.1} parent=1 // pred_check_branch
      %49 = sbr.rel (0) target = $region25
    $region24: #{tpu_custom_call.1} parent=1 // pred_region
      %s51 = ssub.s32 16, 16
      %52 = vsyncadd [#allocation6], %s51
      %s54 = sshll.u32 [#allocation7], 4
      %s55 = int_to_ptr.vmem [resolvable:$true] %s54
      %57 = dma.hbm_to_vmem [thread:$0]  %s5, 16, %s55, [#allocation6]
    $region25: #{tpu_custom_call.1} parent=1 // pred_fallthru
      _
    // Predicated region
    $region26: #{tpu_custom_call.1} parent=1 // pred_check
      _
    $region27: #{tpu_custom_call.1} parent=1 // pred_check_branch
      %59 = sbr.rel (0) target = $region29
    $region28: #{tpu_custom_call.1} parent=1 // pred_region
      _
    $region29: #{tpu_custom_call.1} parent=1 // pred_fallthru
      _
    // Predicated region
    $region30: #{tpu_custom_call.1} parent=1 // pred_check
      _
    $region31: #{tpu_custom_call.1} parent=1 // pred_check_branch
      %61 = sbr.rel (0) target = $region33
    $region32: #{tpu_custom_call.1} parent=1 // pred_region
      %s63 = ssub.s32 128, 128
      %64 = vsyncadd [#allocation9], %s63
      %s66 = sshll.u32 [#allocation8], 4
      %s67 = int_to_ptr.vmem [resolvable:$true] %s66
      %69 = dma.hbm_to_vmem [thread:$0]  %s7, 128, %s67, [#allocation9]
    $region33: #{tpu_custom_call.1} parent=1 // pred_fallthru
      _
    // Predicated region
    $region34: #{tpu_custom_call.1} parent=1 // pred_check
      _
    $region35: #{tpu_custom_call.1} parent=1 // pred_check_branch
      %71 = sbr.rel (0) target = $region37
    $region36: #{tpu_custom_call.1} parent=1 // pred_region
      _
    $region37: #{tpu_custom_call.1} parent=1 // pred_fallthru
      _
    // Predicated region
    $region38: #{tpu_custom_call.1} parent=1 // pred_check
      _
    $region39: #{tpu_custom_call.1} parent=1 // pred_check_branch
      %73 = sbr.rel (0) target = $region41
    $region40: #{tpu_custom_call.1} parent=1 // pred_region
      _
    $region41: #{tpu_custom_call.1} parent=1 // pred_fallthru
      _
    // Predicated region
    $region42: #{tpu_custom_call.1} parent=1 // pred_check
      _
    $region43: #{tpu_custom_call.1} parent=1 // pred_check_branch
      %75 = sbr.rel (0) target = $region45
    $region44: #{tpu_custom_call.1} parent=1 // pred_region
      _
    $region45: #{tpu_custom_call.1} parent=1 // pred_fallthru
      _
    // Predicated region
    $region46: #{tpu_custom_call.1} parent=1 // pred_check
      _
    $region47: #{tpu_custom_call.1} parent=1 // pred_check_branch
      %77 = sbr.rel (0) target = $region49
    $region48: #{tpu_custom_call.1} parent=1 // pred_region
      _
    $region49: #{tpu_custom_call.1} parent=1 // pred_fallthru
      _
    // Predicated region
    $region50: #{tpu_custom_call.1} parent=1 // pred_check
      _
    $region51: #{tpu_custom_call.1} parent=1 // pred_check_branch
      %79 = sbr.rel (0) target = $region53
    $region52: #{tpu_custom_call.1} parent=1 // pred_region
      _
    $region53: #{tpu_custom_call.1} parent=1 // pred_fallthru
      _
    // Predicated region
    $region54: #{tpu_custom_call.1} parent=1 // pred_check
      _
    $region55: #{tpu_custom_call.1} parent=1 // pred_check_branch
      %81 = sbr.rel (0) target = $region57
    $region56: #{tpu_custom_call.1} parent=1 // pred_region
      %82 = dma.done [#allocation3], 128
    $region57: #{tpu_custom_call.1} parent=1 // pred_fallthru
      _
    // Predicated region
    $region58: #{tpu_custom_call.1} parent=1 // pred_check
      _
    $region59: #{tpu_custom_call.1} parent=1 // pred_check_branch
      %84 = sbr.rel (0) target = $region61
    $region60: #{tpu_custom_call.1} parent=1 // pred_region
      %85 = dma.done [#allocation6], 128
    $region61: #{tpu_custom_call.1} parent=1 // pred_fallthru
      _
    // Predicated region
    $region62: #{tpu_custom_call.1} parent=1 // pred_check
      _
    $region63: #{tpu_custom_call.1} parent=1 // pred_check_branch
      %87 = sbr.rel (0) target = $region65
    $region64: #{tpu_custom_call.1} parent=1 // pred_region
      %88 = dma.done [#allocation6], 16
    $region65: #{tpu_custom_call.1} parent=1 // pred_fallthru
      _
    // Predicated region
    $region66: #{tpu_custom_call.1} parent=1 // pred_check
      _
    $region67: #{tpu_custom_call.1} parent=1 // pred_check_branch
      %90 = sbr.rel (0) target = $region69
    $region68: #{tpu_custom_call.1} parent=1 // pred_region
      %91 = dma.done [#allocation9], 128
    $region69: #{tpu_custom_call.1} parent=1 // pred_fallthru
      _
    %v92 = vld [vmem:[%s0] sm:$0xff]
    %v93 = vld [vmem:[%s0 + $0x8] sm:$0xff]
    %v94 = vld [vmem:[%s0 + $0x10] sm:$0xff]
    %v95 = vld [vmem:[%s1] sm:$0xff]
    %v96 = vld [vmem:[%s1 + $0x8] sm:$0xff]
    %v97 = vld [vmem:[%s1 + $0x10] sm:$0xff]
    %v98 = vld [vmem:[#allocation2] sm:$0xff]
    %v99 = vld [vmem:[%s3] sm:$0x1]
    %v101 = vlaneseq
    %v102 = vshrl.u32 %v101, 7
    %v103 = vsub.s32 0, %v102
    %v104 = vrot.slane %v99, %v103
    %vm106 = vcmask 64512
    %v108 = vsel %vm106, %v92, 0
    %v111 = vsel %vm106, %v93, 0
    %v114 = vsel %vm106, %v94, 0
    %116 = vmatprep.subr.mxu0 0.0
    %117 = vmatpush1.msra.mxu0 0.0
    %118 = vmatprep.subr.mxu0 0.0
    %119 = vmatpush1.msra.mxu0 0.0
    %120 = vmatprep.subr.mxu0 0.0
    %121 = vmatpush1.msra.mxu0 0.0
    %122 = vmatprep.subr.mxu0 0.0
    %123 = vmatpush1.msra.mxu0 0.0
    %124 = vmatprep.subr.mxu0 0.0
    %125 = vmatpush1.msra.mxu0 0.0
    %126 = vmatprep.subr.mxu0 0.0
    %127 = vmatpush1.msra.mxu0 0.0
    %128 = vmatprep.subr.mxu0 0.0
    %129 = vmatpush1.msra.mxu0 0.0
    %130 = vmatprep.subr.mxu0 0.0
    %131 = vmatpush1.msra.mxu0 0.0
    %132 = vmatprep.subr.mxu0 0.0
    %133 = vmatpush1.msra.mxu0 0.0
    %134 = vmatprep.subr.mxu0 0.0
    %135 = vmatpush1.msra.mxu0 0.0
    %136 = vmatprep.subr.mxu0 0.0
    %137 = vmatpush1.msra.mxu0 0.0
    %138 = vmatprep.subr.mxu0 0.0
    %139 = vmatpush1.msra.mxu0 0.0
    %140 = vmatprep.subr.mxu0 0.0
    %141 = vmatpush1.msra.mxu0 0.0
    %142 = vmatprep.subr.mxu0 0.0
    %143 = vmatpush1.msra.mxu0 0.0
    %144 = vmatprep.subr.mxu0 0.0
    %145 = vmatpush1.msra.mxu0 0.0
    %146 = vmatprep.subr.mxu0 0.0
    %147 = vmatpush1.msra.mxu0 %v98
    %148 = vmatprep.subr.mxu0 0.0
    %149 = vmatpush2.msra.mxu0 0.0
    %150 = vmatprep.subr.mxu0 0.0
    %151 = vmatpush2.msra.mxu0 0.0
    %152 = vmatprep.subr.mxu0 0.0
    %153 = vmatpush2.msra.mxu0 0.0
    %154 = vmatprep.subr.mxu0 0.0
    %155 = vmatpush2.msra.mxu0 0.0
    %156 = vmatprep.subr.mxu0 0.0
    %157 = vmatpush2.msra.mxu0 0.0
    %158 = vmatprep.subr.mxu0 0.0
    %159 = vmatpush2.msra.mxu0 0.0
    %160 = vmatprep.subr.mxu0 0.0
    %161 = vmatpush2.msra.mxu0 0.0
    %162 = vmatprep.subr.mxu0 0.0
    %163 = vmatpush2.msra.mxu0 0.0
    %164 = vmatprep.subr.mxu0 0.0
    %165 = vmatpush2.msra.mxu0 0.0
    %166 = vmatprep.subr.mxu0 0.0
    %167 = vmatpush2.msra.mxu0 0.0
    %168 = vmatprep.subr.mxu0 0.0
    %169 = vmatpush2.msra.mxu0 0.0
    %170 = vmatprep.subr.mxu0 0.0
    %171 = vmatpush2.msra.mxu0 0.0
    %172 = vmatprep.subr.mxu0 0.0
    %173 = vmatpush2.msra.mxu0 0.0
    %174 = vmatprep.subr.mxu0 0.0
    %175 = vmatpush2.msra.mxu0 0.0
    %176 = vmatprep.subr.mxu0 0.0
    %177 = vmatpush2.msra.mxu0 0.0
    %178 = vmatprep.subr.mxu0 0.0
    %179 = vmatpush2.msra.mxu0 0.0
    %180 = vmatprep.mubr.f32.mxu0 0.0
    %181 = vmatmul.mubr.f32.gmra.mxu0 %v108
    %v182 = vpop.f32.mrf.mxu0
    %v183 = vadd.f32 %v104, %v182
    %v184 = vpop.f32.mrf.mxu0
    %185 = vmatprep.mubr.f32.mxu0 0.0
    %186 = vmatmul.mubr.f32.gmra.mxu0 %v111
    %v187 = vpop.f32.mrf.mxu0
    %v188 = vadd.f32 %v104, %v187
    %v189 = vpop.f32.mrf.mxu0
    %190 = vmatprep.mubr.f32.mxu0 0.0
    %191 = vmatmul.mubr.f32.gmra.mxu0 %v114
    %v192 = vpop.f32.mrf.mxu0
    %v193 = vadd.f32 %v104, %v192
    %v194 = vpop.f32.mrf.mxu0
    %195 = vdwg.mxu0
    %v196 = vmax.f32 %v183, 0.0
    %v197 = vmax.f32 %v188, 0.0
    %v198 = vmax.f32 %v193, 0.0
    %v199 = vld [vmem:[#allocation5] sm:$0xff]
    %v200 = vld [vmem:[#allocation7] sm:$0x1]
    %v202 = vlaneseq
    %v203 = vshrl.u32 %v202, 7
    %v204 = vsub.s32 0, %v203
    %v205 = vrot.slane %v200, %v204
    %v208 = vsel %vm106, %v196, 0
    %v211 = vsel %vm106, %v197, 0
    %v214 = vsel %vm106, %v198, 0
    %216 = vmatprep.subr.mxu0 0.0
    %217 = vmatpush1.msra.mxu0 0.0
    %218 = vmatprep.subr.mxu0 0.0
    %219 = vmatpush1.msra.mxu0 0.0
    %220 = vmatprep.subr.mxu0 0.0
    %221 = vmatpush1.msra.mxu0 0.0
    %222 = vmatprep.subr.mxu0 0.0
    %223 = vmatpush1.msra.mxu0 0.0
    %224 = vmatprep.subr.mxu0 0.0
    %225 = vmatpush1.msra.mxu0 0.0
    %226 = vmatprep.subr.mxu0 0.0
    %227 = vmatpush1.msra.mxu0 0.0
    %228 = vmatprep.subr.mxu0 0.0
    %229 = vmatpush1.msra.mxu0 0.0
    %230 = vmatprep.subr.mxu0 0.0
    %231 = vmatpush1.msra.mxu0 0.0
    %232 = vmatprep.subr.mxu0 0.0
    %233 = vmatpush1.msra.mxu0 0.0
    %234 = vmatprep.subr.mxu0 0.0
    %235 = vmatpush1.msra.mxu0 0.0
    %236 = vmatprep.subr.mxu0 0.0
    %237 = vmatpush1.msra.mxu0 0.0
    %238 = vmatprep.subr.mxu0 0.0
    %239 = vmatpush1.msra.mxu0 0.0
    %240 = vmatprep.subr.mxu0 0.0
    %241 = vmatpush1.msra.mxu0 0.0
    %242 = vmatprep.subr.mxu0 0.0
    %243 = vmatpush1.msra.mxu0 0.0
    %244 = vmatprep.subr.mxu0 0.0
    %245 = vmatpush1.msra.mxu0 0.0
    %246 = vmatprep.subr.mxu0 0.0
    %247 = vmatpush1.msra.mxu0 %v199
    %248 = vmatprep.subr.mxu0 0.0
    %249 = vmatpush2.msra.mxu0 0.0
    %250 = vmatprep.subr.mxu0 0.0
    %251 = vmatpush2.msra.mxu0 0.0
    %252 = vmatprep.subr.mxu0 0.0
    %253 = vmatpush2.msra.mxu0 0.0
    %254 = vmatprep.subr.mxu0 0.0
    %255 = vmatpush2.msra.mxu0 0.0
    %256 = vmatprep.subr.mxu0 0.0
    %257 = vmatpush2.msra.mxu0 0.0
    %258 = vmatprep.subr.mxu0 0.0
    %259 = vmatpush2.msra.mxu0 0.0
    %260 = vmatprep.subr.mxu0 0.0
    %261 = vmatpush2.msra.mxu0 0.0
    %262 = vmatprep.subr.mxu0 0.0
    %263 = vmatpush2.msra.mxu0 0.0
    %264 = vmatprep.subr.mxu0 0.0
    %265 = vmatpush2.msra.mxu0 0.0
    %266 = vmatprep.subr.mxu0 0.0
    %267 = vmatpush2.msra.mxu0 0.0
    %268 = vmatprep.subr.mxu0 0.0
    %269 = vmatpush2.msra.mxu0 0.0
    %270 = vmatprep.subr.mxu0 0.0
    %271 = vmatpush2.msra.mxu0 0.0
    %272 = vmatprep.subr.mxu0 0.0
    %273 = vmatpush2.msra.mxu0 0.0
    %274 = vmatprep.subr.mxu0 0.0
    %275 = vmatpush2.msra.mxu0 0.0
    %276 = vmatprep.subr.mxu0 0.0
    %277 = vmatpush2.msra.mxu0 0.0
    %278 = vmatprep.subr.mxu0 0.0
    %279 = vmatpush2.msra.mxu0 0.0
    %280 = vmatprep.mubr.f32.mxu0 0.0
    %281 = vmatmul.mubr.f32.gmra.mxu0 %v208
    %v282 = vpop.f32.mrf.mxu0
    %v283 = vadd.f32 %v205, %v282
    %v284 = vpop.f32.mrf.mxu0
    %285 = vmatprep.mubr.f32.mxu0 0.0
    %286 = vmatmul.mubr.f32.gmra.mxu0 %v211
    %v287 = vpop.f32.mrf.mxu0
    %v288 = vadd.f32 %v205, %v287
    %v289 = vpop.f32.mrf.mxu0
    %290 = vmatprep.mubr.f32.mxu0 0.0
    %291 = vmatmul.mubr.f32.gmra.mxu0 %v214
    %v292 = vpop.f32.mrf.mxu0
    %v293 = vadd.f32 %v205, %v292
    %v294 = vpop.f32.mrf.mxu0
    %295 = vdwg.mxu0
    %v296 = vld [vmem:[%s6] sm:$0xff]
    %v297 = vld [vmem:[#allocation8] sm:$0xff]
    %v299 = vsel %vm106, %v95, 0
    %v302 = vsel %vm106, %v96, 0
    %v305 = vsel %vm106, %v97, 0
    %307 = vmatprep.subr.mxu0 0.0
    %308 = vmatpush1.msra.mxu0 0.0
    %309 = vmatprep.subr.mxu0 0.0
    %310 = vmatpush1.msra.mxu0 0.0
    %311 = vmatprep.subr.mxu0 0.0
    %312 = vmatpush1.msra.mxu0 0.0
    %313 = vmatprep.subr.mxu0 0.0
    %314 = vmatpush1.msra.mxu0 0.0
    %315 = vmatprep.subr.mxu0 0.0
    %316 = vmatpush1.msra.mxu0 0.0
    %317 = vmatprep.subr.mxu0 0.0
    %318 = vmatpush1.msra.mxu0 0.0
    %319 = vmatprep.subr.mxu0 0.0
    %320 = vmatpush1.msra.mxu0 0.0
    %321 = vmatprep.subr.mxu0 0.0
    %322 = vmatpush1.msra.mxu0 0.0
    %323 = vmatprep.subr.mxu0 0.0
    %324 = vmatpush1.msra.mxu0 0.0
    %325 = vmatprep.subr.mxu0 0.0
    %326 = vmatpush1.msra.mxu0 0.0
    %327 = vmatprep.subr.mxu0 0.0
    %328 = vmatpush1.msra.mxu0 0.0
    %329 = vmatprep.subr.mxu0 0.0
    %330 = vmatpush1.msra.mxu0 0.0
    %331 = vmatprep.subr.mxu0 0.0
    %332 = vmatpush1.msra.mxu0 0.0
    %333 = vmatprep.subr.mxu0 0.0
    %334 = vmatpush1.msra.mxu0 0.0
    %335 = vmatprep.subr.mxu0 0.0
    %336 = vmatpush1.msra.mxu0 0.0
    %337 = vmatprep.subr.mxu0 0.0
    %338 = vmatpush1.msra.mxu0 %v297
    %339 = vmatprep.subr.mxu0 0.0
    %340 = vmatpush2.msra.mxu0 0.0
    %341 = vmatprep.subr.mxu0 0.0
    %342 = vmatpush2.msra.mxu0 0.0
    %343 = vmatprep.subr.mxu0 0.0
    %344 = vmatpush2.msra.mxu0 0.0
    %345 = vmatprep.subr.mxu0 0.0
    %346 = vmatpush2.msra.mxu0 0.0
    %347 = vmatprep.subr.mxu0 0.0
    %348 = vmatpush2.msra.mxu0 0.0
    %349 = vmatprep.subr.mxu0 0.0
    %350 = vmatpush2.msra.mxu0 0.0
    %351 = vmatprep.subr.mxu0 0.0
    %352 = vmatpush2.msra.mxu0 0.0
    %353 = vmatprep.subr.mxu0 0.0
    %354 = vmatpush2.msra.mxu0 0.0
    %355 = vmatprep.subr.mxu0 0.0
    %356 = vmatpush2.msra.mxu0 0.0
    %357 = vmatprep.subr.mxu0 0.0
    %358 = vmatpush2.msra.mxu0 0.0
    %359 = vmatprep.subr.mxu0 0.0
    %360 = vmatpush2.msra.mxu0 0.0
    %361 = vmatprep.subr.mxu0 0.0
    %362 = vmatpush2.msra.mxu0 0.0
    %363 = vmatprep.subr.mxu0 0.0
    %364 = vmatpush2.msra.mxu0 0.0
    %365 = vmatprep.subr.mxu0 0.0
    %366 = vmatpush2.msra.mxu0 0.0
    %367 = vmatprep.subr.mxu0 0.0
    %368 = vmatpush2.msra.mxu0 0.0
    %369 = vmatprep.subr.mxu0 0.0
    %370 = vmatpush2.msra.mxu0 0.0
    %371 = vmatprep.mubr.f32.mxu0 0.0
    %372 = vmatmul.mubr.f32.gmra.mxu0 %v299
    %v373 = vpop.f32.mrf.mxu0
    %v374 = vadd.f32 0.0, %v373
    %v375 = vpop.f32.mrf.mxu0
    %376 = vmatprep.mubr.f32.mxu0 0.0
    %377 = vmatmul.mubr.f32.gmra.mxu0 %v302
    %v378 = vpop.f32.mrf.mxu0
    %v379 = vadd.f32 0.0, %v378
    %v380 = vpop.f32.mrf.mxu0
    %381 = vmatprep.mubr.f32.mxu0 0.0
    %382 = vmatmul.mubr.f32.gmra.mxu0 %v305
    %v383 = vpop.f32.mrf.mxu0
    %v384 = vadd.f32 0.0, %v383
    %v385 = vpop.f32.mrf.mxu0
    %386 = vdwg.mxu0
    %v388 = vsel %vm106, %v283, 0
    %v391 = vsel %vm106, %v288, 0
    %v394 = vsel %vm106, %v293, 0
    %396 = vmatprep.subr.mxu0 0.0
    %397 = vmatpush1.msra.mxu0 0.0
    %398 = vmatprep.subr.mxu0 0.0
    %399 = vmatpush1.msra.mxu0 0.0
    %400 = vmatprep.subr.mxu0 0.0
    %401 = vmatpush1.msra.mxu0 0.0
    %402 = vmatprep.subr.mxu0 0.0
    %403 = vmatpush1.msra.mxu0 0.0
    %404 = vmatprep.subr.mxu0 0.0
    %405 = vmatpush1.msra.mxu0 0.0
    %406 = vmatprep.subr.mxu0 0.0
    %407 = vmatpush1.msra.mxu0 0.0
    %408 = vmatprep.subr.mxu0 0.0
    %409 = vmatpush1.msra.mxu0 0.0
    %410 = vmatprep.subr.mxu0 0.0
    %411 = vmatpush1.msra.mxu0 0.0
    %412 = vmatprep.subr.mxu0 0.0
    %413 = vmatpush1.msra.mxu0 0.0
    %414 = vmatprep.subr.mxu0 0.0
    %415 = vmatpush1.msra.mxu0 0.0
    %416 = vmatprep.subr.mxu0 0.0
    %417 = vmatpush1.msra.mxu0 0.0
    %418 = vmatprep.subr.mxu0 0.0
    %419 = vmatpush1.msra.mxu0 0.0
    %420 = vmatprep.subr.mxu0 0.0
    %421 = vmatpush1.msra.mxu0 0.0
    %422 = vmatprep.subr.mxu0 0.0
    %423 = vmatpush1.msra.mxu0 0.0
    %424 = vmatprep.subr.mxu0 0.0
    %425 = vmatpush1.msra.mxu0 0.0
    %426 = vmatprep.subr.mxu0 0.0
    %427 = vmatpush1.msra.mxu0 %v296
    %428 = vmatprep.subr.mxu0 0.0
    %429 = vmatpush2.msra.mxu0 0.0
    %430 = vmatprep.subr.mxu0 0.0
    %431 = vmatpush2.msra.mxu0 0.0
    %432 = vmatprep.subr.mxu0 0.0
    %433 = vmatpush2.msra.mxu0 0.0
    %434 = vmatprep.subr.mxu0 0.0
    %435 = vmatpush2.msra.mxu0 0.0
    %436 = vmatprep.subr.mxu0 0.0
    %437 = vmatpush2.msra.mxu0 0.0
    %438 = vmatprep.subr.mxu0 0.0
    %439 = vmatpush2.msra.mxu0 0.0
    %440 = vmatprep.subr.mxu0 0.0
    %441 = vmatpush2.msra.mxu0 0.0
    %442 = vmatprep.subr.mxu0 0.0
    %443 = vmatpush2.msra.mxu0 0.0
    %444 = vmatprep.subr.mxu0 0.0
    %445 = vmatpush2.msra.mxu0 0.0
    %446 = vmatprep.subr.mxu0 0.0
    %447 = vmatpush2.msra.mxu0 0.0
    %448 = vmatprep.subr.mxu0 0.0
    %449 = vmatpush2.msra.mxu0 0.0
    %450 = vmatprep.subr.mxu0 0.0
    %451 = vmatpush2.msra.mxu0 0.0
    %452 = vmatprep.subr.mxu0 0.0
    %453 = vmatpush2.msra.mxu0 0.0
    %454 = vmatprep.subr.mxu0 0.0
    %455 = vmatpush2.msra.mxu0 0.0
    %456 = vmatprep.subr.mxu0 0.0
    %457 = vmatpush2.msra.mxu0 0.0
    %458 = vmatprep.subr.mxu0 0.0
    %459 = vmatpush2.msra.mxu0 0.0
    %460 = vmatprep.mubr.f32.mxu0 0.0
    %461 = vmatmul.mubr.f32.gmra.mxu0 %v388
    %v462 = vpop.f32.mrf.mxu0
    %v463 = vadd.f32 %v374, %v462
    %v464 = vpop.f32.mrf.mxu0
    %465 = vmatprep.mubr.f32.mxu0 0.0
    %466 = vmatmul.mubr.f32.gmra.mxu0 %v391
    %v467 = vpop.f32.mrf.mxu0
    %v468 = vadd.f32 %v379, %v467
    %v469 = vpop.f32.mrf.mxu0
    %470 = vmatprep.mubr.f32.mxu0 0.0
    %471 = vmatmul.mubr.f32.gmra.mxu0 %v394
    %v472 = vpop.f32.mrf.mxu0
    %v473 = vadd.f32 %v384, %v472
    %v474 = vpop.f32.mrf.mxu0
    %475 = vdwg.mxu0
    %v476 = vld [vmem:[%s8] sm:$0x1]
    %v478 = vlaneseq
    %v479 = vshrl.u32 %v478, 7
    %v480 = vsub.s32 0, %v479
    %v481 = vrot.slane %v476, %v480
    %v483 = vadd.f32 %v463, %v481
    %v484 = vadd.f32 %v468, %v481
    %v485 = vadd.f32 %v473, %v481
    %v486 = vmax.f32 %v483, 0.0
    %v487 = vmax.f32 %v484, 0.0
    %v488 = vmax.f32 %v485, 0.0
    %v489 = vld [vmem:[%s9] sm:$0xff]
    %v490 = vld [vmem:[%s9 + $0x8] sm:$0xff]
    %v491 = vld [vmem:[%s9 + $0x10] sm:$0xff]
    %v492 = vld [vmem:[%s9 + $0x18] sm:$0xff]
    %v493 = vld [vmem:[%s10] sm:$0x1]
    %v495 = vlaneseq
    %v496 = vshrl.u32 %v495, 7
    %v497 = vsub.s32 0, %v496
    %v498 = vrot.slane %v493, %v497
    %vm500 = vcmask 261120
    %v502 = vsel %vm500, %v486, 0
    %v505 = vsel %vm500, %v487, 0
    %v508 = vsel %vm500, %v488, 0
    %510 = vmatprep.subr.mxu0 0.0
    %511 = vmatpush1.msra.mxu0 0.0
    %512 = vmatprep.subr.mxu0 0.0
    %513 = vmatpush1.msra.mxu0 0.0
    %514 = vmatprep.subr.mxu0 0.0
    %515 = vmatpush1.msra.mxu0 0.0
    %516 = vmatprep.subr.mxu0 0.0
    %517 = vmatpush1.msra.mxu0 0.0
    %518 = vmatprep.subr.mxu0 0.0
    %519 = vmatpush1.msra.mxu0 0.0
    %520 = vmatprep.subr.mxu0 0.0
    %521 = vmatpush1.msra.mxu0 0.0
    %522 = vmatprep.subr.mxu0 0.0
    %523 = vmatpush1.msra.mxu0 0.0
    %524 = vmatprep.subr.mxu0 0.0
    %525 = vmatpush1.msra.mxu0 0.0
    %526 = vmatprep.subr.mxu0 0.0
    %527 = vmatpush1.msra.mxu0 0.0
    %528 = vmatprep.subr.mxu0 0.0
    %529 = vmatpush1.msra.mxu0 0.0
    %530 = vmatprep.subr.mxu0 0.0
    %531 = vmatpush1.msra.mxu0 0.0
    %532 = vmatprep.subr.mxu0 0.0
    %533 = vmatpush1.msra.mxu0 0.0
    %534 = vmatprep.subr.mxu0 0.0
    %535 = vmatpush1.msra.mxu0 %v492
    %536 = vmatprep.subr.mxu0 0.0
    %537 = vmatpush1.msra.mxu0 %v491
    %538 = vmatprep.subr.mxu0 0.0
    %539 = vmatpush1.msra.mxu0 %v490
    %540 = vmatprep.subr.mxu0 0.0
    %541 = vmatpush1.msra.mxu0 %v489
    %542 = vmatprep.subr.mxu0 0.0
    %543 = vmatpush2.msra.mxu0 0.0
    %544 = vmatprep.subr.mxu0 0.0
    %545 = vmatpush2.msra.mxu0 0.0
    %546 = vmatprep.subr.mxu0 0.0
    %547 = vmatpush2.msra.mxu0 0.0
    %548 = vmatprep.subr.mxu0 0.0
    %549 = vmatpush2.msra.mxu0 0.0
    %550 = vmatprep.subr.mxu0 0.0
    %551 = vmatpush2.msra.mxu0 0.0
    %552 = vmatprep.subr.mxu0 0.0
    %553 = vmatpush2.msra.mxu0 0.0
    %554 = vmatprep.subr.mxu0 0.0
    %555 = vmatpush2.msra.mxu0 0.0
    %556 = vmatprep.subr.mxu0 0.0
    %557 = vmatpush2.msra.mxu0 0.0
    %558 = vmatprep.subr.mxu0 0.0
    %559 = vmatpush2.msra.mxu0 0.0
    %560 = vmatprep.subr.mxu0 0.0
    %561 = vmatpush2.msra.mxu0 0.0
    %562 = vmatprep.subr.mxu0 0.0
    %563 = vmatpush2.msra.mxu0 0.0
    %564 = vmatprep.subr.mxu0 0.0
    %565 = vmatpush2.msra.mxu0 0.0
    %566 = vmatprep.subr.mxu0 0.0
    %567 = vmatpush2.msra.mxu0 0.0
    %568 = vmatprep.subr.mxu0 0.0
    %569 = vmatpush2.msra.mxu0 0.0
    %570 = vmatprep.subr.mxu0 0.0
    %571 = vmatpush2.msra.mxu0 0.0
    %572 = vmatprep.subr.mxu0 0.0
    %573 = vmatpush2.msra.mxu0 0.0
    %574 = vmatprep.mubr.f32.mxu0 0.0
    %575 = vmatmul.mubr.f32.gmra.mxu0 %v502
    %v576 = vpop.f32.mrf.mxu0
    %v577 = vadd.f32 %v498, %v576
    %v578 = vpop.f32.mrf.mxu0
    %579 = vmatprep.mubr.f32.mxu0 0.0
    %580 = vmatmul.mubr.f32.gmra.mxu0 %v505
    %v581 = vpop.f32.mrf.mxu0
    %v582 = vadd.f32 %v498, %v581
    %v583 = vpop.f32.mrf.mxu0
    %584 = vmatprep.mubr.f32.mxu0 0.0
    %585 = vmatmul.mubr.f32.gmra.mxu0 %v508
    %v586 = vpop.f32.mrf.mxu0
    %v587 = vadd.f32 %v498, %v586
    %v588 = vpop.f32.mrf.mxu0
    %589 = vdwg.mxu0
    %v590 = vmax.f32 %v577, 0.0
    %v591 = vmax.f32 %v582, 0.0
    %v592 = vmax.f32 %v587, 0.0
    %v593 = vld [vmem:[%s11] sm:$0xff]
    %v594 = vld [vmem:[%s11 + $0x8] sm:$0xff]
    %v595 = vld [vmem:[%s11 + $0x10] sm:$0xff]
    %v596 = vld [vmem:[%s11 + $0x18] sm:$0xff]
    %v597 = vld [vmem:[%s12] sm:$0x1]
    %v599 = vlaneseq
    %v600 = vshrl.u32 %v599, 7
    %v601 = vsub.s32 0, %v600
    %v602 = vrot.slane %v597, %v601
    %v605 = vsel %vm500, %v590, 0
    %v608 = vsel %vm500, %v591, 0
    %v611 = vsel %vm500, %v592, 0
    %613 = vmatprep.subr.mxu0 0.0
    %614 = vmatpush1.msra.mxu0 0.0
    %615 = vmatprep.subr.mxu0 0.0
    %616 = vmatpush1.msra.mxu0 0.0
    %617 = vmatprep.subr.mxu0 0.0
    %618 = vmatpush1.msra.mxu0 0.0
    %619 = vmatprep.subr.mxu0 0.0
    %620 = vmatpush1.msra.mxu0 0.0
    %621 = vmatprep.subr.mxu0 0.0
    %622 = vmatpush1.msra.mxu0 0.0
    %623 = vmatprep.subr.mxu0 0.0
    %624 = vmatpush1.msra.mxu0 0.0
    %625 = vmatprep.subr.mxu0 0.0
    %626 = vmatpush1.msra.mxu0 0.0
    %627 = vmatprep.subr.mxu0 0.0
    %628 = vmatpush1.msra.mxu0 0.0
    %629 = vmatprep.subr.mxu0 0.0
    %630 = vmatpush1.msra.mxu0 0.0
    %631 = vmatprep.subr.mxu0 0.0
    %632 = vmatpush1.msra.mxu0 0.0
    %633 = vmatprep.subr.mxu0 0.0
    %634 = vmatpush1.msra.mxu0 0.0
    %635 = vmatprep.subr.mxu0 0.0
    %636 = vmatpush1.msra.mxu0 0.0
    %637 = vmatprep.subr.mxu0 0.0
    %638 = vmatpush1.msra.mxu0 %v596
    %639 = vmatprep.subr.mxu0 0.0
    %640 = vmatpush1.msra.mxu0 %v595
    %641 = vmatprep.subr.mxu0 0.0
    %642 = vmatpush1.msra.mxu0 %v594
    %643 = vmatprep.subr.mxu0 0.0
    %644 = vmatpush1.msra.mxu0 %v593
    %645 = vmatprep.subr.mxu0 0.0
    %646 = vmatpush2.msra.mxu0 0.0
    %647 = vmatprep.subr.mxu0 0.0
    %648 = vmatpush2.msra.mxu0 0.0
    %649 = vmatprep.subr.mxu0 0.0
    %650 = vmatpush2.msra.mxu0 0.0
    %651 = vmatprep.subr.mxu0 0.0
    %652 = vmatpush2.msra.mxu0 0.0
    %653 = vmatprep.subr.mxu0 0.0
    %654 = vmatpush2.msra.mxu0 0.0
    %655 = vmatprep.subr.mxu0 0.0
    %656 = vmatpush2.msra.mxu0 0.0
    %657 = vmatprep.subr.mxu0 0.0
    %658 = vmatpush2.msra.mxu0 0.0
    %659 = vmatprep.subr.mxu0 0.0
    %660 = vmatpush2.msra.mxu0 0.0
    %661 = vmatprep.subr.mxu0 0.0
    %662 = vmatpush2.msra.mxu0 0.0
    %663 = vmatprep.subr.mxu0 0.0
    %664 = vmatpush2.msra.mxu0 0.0
    %665 = vmatprep.subr.mxu0 0.0
    %666 = vmatpush2.msra.mxu0 0.0
    %667 = vmatprep.subr.mxu0 0.0
    %668 = vmatpush2.msra.mxu0 0.0
    %669 = vmatprep.subr.mxu0 0.0
    %670 = vmatpush2.msra.mxu0 0.0
    %671 = vmatprep.subr.mxu0 0.0
    %672 = vmatpush2.msra.mxu0 0.0
    %673 = vmatprep.subr.mxu0 0.0
    %674 = vmatpush2.msra.mxu0 0.0
    %675 = vmatprep.subr.mxu0 0.0
    %676 = vmatpush2.msra.mxu0 0.0
    %677 = vmatprep.mubr.f32.mxu0 0.0
    %678 = vmatmul.mubr.f32.gmra.mxu0 %v605
    %v679 = vpop.f32.mrf.mxu0
    %v680 = vadd.f32 %v602, %v679
    %v681 = vpop.f32.mrf.mxu0
    %682 = vmatprep.mubr.f32.mxu0 0.0
    %683 = vmatmul.mubr.f32.gmra.mxu0 %v608
    %v684 = vpop.f32.mrf.mxu0
    %v685 = vadd.f32 %v602, %v684
    %v686 = vpop.f32.mrf.mxu0
    %687 = vmatprep.mubr.f32.mxu0 0.0
    %688 = vmatmul.mubr.f32.gmra.mxu0 %v611
    %v689 = vpop.f32.mrf.mxu0
    %v690 = vadd.f32 %v602, %v689
    %v691 = vpop.f32.mrf.mxu0
    %692 = vdwg.mxu0
    %693 = vst [vmem:[#allocation10] sm:$0xff] %v680
    %694 = vst [vmem:[#allocation10 + $0x8] sm:$0xff] %v685
    %695 = vst [vmem:[#allocation10 + $0x10] sm:$0xff] %v690
    // Predicated region
    $region70: #{tpu_custom_call.1} parent=1 // pred_check
      _
    $region71: #{tpu_custom_call.1} parent=1 // pred_check_branch
      %697 = sbr.rel (0) target = $region73
    $region72: #{tpu_custom_call.1} parent=1 // pred_region
      %s699 = ssub.s32 384, 384
      %700 = vsyncadd [#allocation4], %s699
      %s701 = sshll.u32 [#allocation10], 4
      %s702 = int_to_ptr.vmem [resolvable:$true] %s701
      %707 = dma.vmem_to_hbm [thread:$0]  %s702, 384, %s13, [#allocation4], 128, 128, 8
    $region73: #{tpu_custom_call.1} parent=1 // pred_fallthru
      _
    // Predicated region
    $region74: #{tpu_custom_call.1} parent=1 // pred_check
      _
    $region75: #{tpu_custom_call.1} parent=1 // pred_check_branch
      %709 = sbr.rel (0) target = $region77
    $region76: #{tpu_custom_call.1} parent=1 // pred_region
      %710 = dma.done [#allocation4], 384
    $region77: #{tpu_custom_call.1} parent=1 // pred_fallthru
      _
    %711 = vsyncpa [#allocation3], 1
    %712 = vsyncpa [#allocation6], 1
    %713 = vsyncpa [#allocation9], 1
    %714 = vsyncpa [#allocation4], 1

</llo_original>
